<compile_context>
chip_gen: v6e
topology: v6e:2x2x1
jax: 0.10.0
libtpu: 0.0.40
codegen_flags: <defaults>
</compile_context>

<pallas_src>
import functools

import jax
import jax.numpy as jnp
from jax import lax
from jax.experimental import pallas as pl
from jax.experimental.pallas import tpu as pltpu


def _resblock_kernel(x_ref, wbig_ref, bbig_ref, w2_ref, b2_ref, o_ref, *, neg_slope):
    tb, _, length = x_ref.shape
    cout = w2_ref.shape[0]

    wbig = wbig_ref[...]          # (2*Cout, 4*Cin)  compute dtype
    bbig = bbig_ref[...]          # (2*Cout, 1)      f32
    w2 = w2_ref[...]              # (Cout, 3*Cout)   compute dtype
    b2 = b2_ref[...]              # (Cout, 1)        f32
    cdt = wbig.dtype

    # Lane-index masks for the conv halo (zero the single wrapped lane after roll).
    lane = lax.broadcasted_iota(jnp.int32, (1, length), 1)
    not_first = lane > 0
    not_last = lane < (length - 1)

    def shifts(h):
        # h[:, l-1] and h[:, l+1] with zero padding at the sequence edges.
        prev = jnp.where(not_first, pltpu.roll(h, shift=1, axis=1), 0).astype(h.dtype)
        nxt = jnp.where(not_last, pltpu.roll(h, shift=length - 1, axis=1), 0).astype(h.dtype)
        return prev, nxt

    def leaky(v):
        return jnp.maximum(v, v * neg_slope)

    def one_sample(bidx):
        xb = x_ref[bidx]                                                  # (Cin, L)
        h = leaky(xb)
        h_prev, h_next = shifts(h)
        # [conv1 taps on LeakyReLU(x) ; 1x1 residual on raw x] in one MXU dot.
        hbig = jnp.concatenate([h_prev, h, h_next, xb], axis=0)           # (4*Cin, L)
        y = jnp.dot(wbig, hbig, preferred_element_type=jnp.float32) + bbig  # (2*Cout, L)
        y1 = y[:cout]                                                     # conv1 out
        res = y[cout:]                                                    # residual out
        h2 = leaky(y1).astype(cdt)
        h2_prev, h2_next = shifts(h2)
        h2s = jnp.concatenate([h2_prev, h2, h2_next], axis=0)             # (3*Cout, L)
        y2 = jnp.dot(w2, h2s, preferred_element_type=jnp.float32) + b2    # (Cout, L)
        o_ref[bidx] = (y2 + res).astype(o_ref.dtype)

    if tb <= 8:
        # Short, static trip count: full unroll keeps scheduler visibility.
        for b in range(tb):
            one_sample(b)
    else:
        def body(b, carry):
            one_sample(b)
            return carry
        lax.fori_loop(0, tb, body, 0)


def _pick_samples_per_step(n, cin, cout, length, itemsize, samples_per_step):
    if samples_per_step is not None:
        tb = max(1, min(n, int(samples_per_step)))
    else:
        per_sample = max(cin, cout) * length * itemsize
        target = 2 << 20          # ~2 MiB for the larger of the in/out per-step slabs
        tb = max(1, min(n, target // max(per_sample, 1)))
        # Keep >= 2 grid steps so both v7x TensorCores (parallel grid axis) get work.
        while tb > 1 and pl.cdiv(n, tb) < 2:
            tb //= 2
    while n % tb:                 # make tb divide N exactly (no ragged last block)
        tb -= 1
    return tb


def resblock_forward(x, w1, b1, w2, b2, wr, br, *, neg_slope=0.1, samples_per_step=None):
    """x: (N, Cin, L); w1: (Cout, Cin, 3); w2: (Cout, Cout, 3); wr: (Cout, Cin, 1); b*: (Cout,)."""
    n, cin, length = x.shape
    cout = w1.shape[0]
    assert w1.shape == (cout, cin, 3) and w2.shape == (cout, cout, 3)
    assert wr.shape == (cout, cin, 1)

    cdt = x.dtype   # feed the MXU in the input dtype (bf16 stays bf16), accumulate in f32

    # Pre-stack weights once in the wrapper (kernel-resident constants).
    zoc = jnp.zeros((cout, cin), cdt)
    w_top = jnp.concatenate([w1[:, :, 0], w1[:, :, 1], w1[:, :, 2], zoc], axis=1)
    w_bot = jnp.concatenate([zoc, zoc, zoc, wr[:, :, 0]], axis=1)
    w_big = jnp.concatenate([w_top, w_bot], axis=0).astype(cdt)             # (2*Cout, 4*Cin)
    b_big = jnp.concatenate([b1, br]).reshape(2 * cout, 1).astype(jnp.float32)

    w2s = jnp.concatenate([w2[:, :, 0], w2[:, :, 1], w2[:, :, 2]], axis=1).astype(cdt)  # (Cout, 3*Cout)
    b2c = b2.reshape(cout, 1).astype(jnp.float32)

    tb = _pick_samples_per_step(n, cin, cout, length, x.dtype.itemsize, samples_per_step)

    return pl.pallas_call(
        functools.partial(_resblock_kernel, neg_slope=neg_slope),
        out_shape=jax.ShapeDtypeStruct((n, cout, length), x.dtype),
        grid=(n // tb,),
        in_specs=[
            pl.BlockSpec((tb, cin, length), lambda i: (i, 0, 0)),      # x (streamed)
            pl.BlockSpec((2 * cout, 4 * cin), lambda i: (0, 0)),       # W_big (resident)
            pl.BlockSpec((2 * cout, 1), lambda i: (0, 0)),             # b_big
            pl.BlockSpec((cout, 3 * cout), lambda i: (0, 0)),          # W2 stacked
            pl.BlockSpec((cout, 1), lambda i: (0, 0)),                 # b2
        ],
        out_specs=pl.BlockSpec((tb, cout, length), lambda i: (i, 0, 0)),
        compiler_params=pltpu.CompilerParams(
            dimension_semantics=("parallel",),
            vmem_limit_bytes=32 * 1024 * 1024,
        ),
    )(x, w_big, b_big, w2s, b2c)


if __name__ == "__main__":
    key = jax.random.PRNGKey(0)
    N, CIN, COUT, L = 2, 8, 8, 128   # small, lane-dense L; 8-aligned channels
    kx, k1, kb1, k2, kb2, kr, kbr = jax.random.split(key, 7)
    x = jax.random.normal(kx, (N, CIN, L), dtype=jnp.float32)
    w1 = 0.2 * jax.random.normal(k1, (COUT, CIN, 3), dtype=jnp.float32)
    b1 = 0.1 * jax.random.normal(kb1, (COUT,), dtype=jnp.float32)
    w2 = 0.2 * jax.random.normal(k2, (COUT, COUT, 3), dtype=jnp.float32)
    b2 = 0.1 * jax.random.normal(kb2, (COUT,), dtype=jnp.float32)
    wr = 0.2 * jax.random.normal(kr, (COUT, CIN, 1), dtype=jnp.float32)
    br = 0.1 * jax.random.normal(kbr, (COUT,), dtype=jnp.float32)

    y = resblock_forward(x, w1, b1, w2, b2, wr, br)
    y = jax.block_until_ready(y)

    # Pure-JAX reference with identical semantics (cross-correlation, same padding).
    def leaky(v):
        return jnp.where(v >= 0, v, 0.1 * v)

    def conv1d(h, w, b, pad):
        o = lax.conv_general_dilated(
            h, w, window_strides=(1,), padding=[(pad, pad)],
            dimension_numbers=("NCH", "OIH", "NCH"))
        return o + b[None, :, None]

    h = leaky(x)
    h = conv1d(h, w1, b1, 1)
    h = leaky(h)
    h = conv1d(h, w2, b2, 1)
    ref = h + conv1d(x, wr, br, 0)

    err = float(jnp.max(jnp.abs(y - ref)))
    assert y.shape == ref.shape, (y.shape, ref.shape)
    assert err < 1e-2, err
    print("KERNEL_OK")
</pallas_src>

<mosaic_0001>
module attributes {stable_mosaic.version = 11 : i64} {
  func.func @_resblock_kernel(%arg0: i32, %arg1: memref<1x8x128xf32, #tpu.memory_space<vmem>>, %arg2: memref<16x32xf32, #tpu.memory_space<vmem>>, %arg3: memref<16x1xf32, #tpu.memory_space<vmem>>, %arg4: memref<8x24xf32, #tpu.memory_space<vmem>>, %arg5: memref<8x1xf32, #tpu.memory_space<vmem>>, %arg6: memref<1x8x128xf32, #tpu.memory_space<vmem>>) attributes {dimension_semantics = [#tpu.dimension_semantics<parallel>], iteration_bounds = array<i64: 2>, scalar_prefetch = 0 : i64, scratch_operands = 0 : i64, tpu.core_type = #tpu.core_type<tc>, window_params = [{transform_indices = @transform_0, window_bounds = array<i64: 1, 8, 128>}, {pipeline_mode = #tpu.pipeline_mode<synchronous>, transform_indices = @transform_1, window_bounds = array<i64: 16, 32>}, {pipeline_mode = #tpu.pipeline_mode<synchronous>, transform_indices = @transform_2, window_bounds = array<i64: 16, 1>}, {pipeline_mode = #tpu.pipeline_mode<synchronous>, transform_indices = @transform_3, window_bounds = array<i64: 8, 24>}, {pipeline_mode = #tpu.pipeline_mode<synchronous>, transform_indices = @transform_4, window_bounds = array<i64: 8, 1>}, {transform_indices = @transform_5, window_bounds = array<i64: 1, 8, 128>}]} {
    %c0 = arith.constant 0 : index
    %c0_0 = arith.constant 0 : index
    %0 = vector.load %arg2[%c0, %c0_0] : memref<16x32xf32, #tpu.memory_space<vmem>>, vector<16x32xf32>
    %c0_1 = arith.constant 0 : index
    %c0_2 = arith.constant 0 : index
    %1 = vector.load %arg3[%c0_1, %c0_2] : memref<16x1xf32, #tpu.memory_space<vmem>>, vector<16x1xf32>
    %c0_3 = arith.constant 0 : index
    %c0_4 = arith.constant 0 : index
    %2 = vector.load %arg4[%c0_3, %c0_4] : memref<8x24xf32, #tpu.memory_space<vmem>>, vector<8x24xf32>
    %c0_5 = arith.constant 0 : index
    %c0_6 = arith.constant 0 : index
    %3 = vector.load %arg5[%c0_5, %c0_6] : memref<8x1xf32, #tpu.memory_space<vmem>>, vector<8x1xf32>
    %4 = tpu.iota {dimensions = array<i32: 1>} : vector<1x128xi32>
    %c0_i32 = arith.constant 0 : i32
    %5 = vector.broadcast %c0_i32 : i32 to vector<1x128xi32>
    %6 = arith.cmpi sgt, %4, %5 : vector<1x128xi32>
    %c127_i32 = arith.constant 127 : i32
    %7 = vector.broadcast %c127_i32 : i32 to vector<1x128xi32>
    %8 = arith.cmpi slt, %4, %7 : vector<1x128xi32>
    %c0_7 = arith.constant 0 : index
    %c0_8 = arith.constant 0 : index
    %c0_9 = arith.constant 0 : index
    %9 = vector.load %arg1[%c0_7, %c0_8, %c0_9] : memref<1x8x128xf32, #tpu.memory_space<vmem>>, vector<1x8x128xf32>
    %10 = vector.shape_cast %9 : vector<1x8x128xf32> to vector<8x128xf32>
    %cst = arith.constant 1.000000e-01 : f32
    %11 = vector.broadcast %cst : f32 to vector<8x128xf32>
    %12 = arith.mulf %10, %11 : vector<8x128xf32>
    %13 = arith.maximumf %10, %12 : vector<8x128xf32>
    %c1_i32 = arith.constant 1 : i32
    %14 = tpu.dynamic_rotate %13 by %c1_i32 dim 1 : vector<8x128xf32>, i32 -> vector<8x128xf32>
    %c0_i32_10 = arith.constant 0 : i32
    %15 = arith.sitofp %c0_i32_10 : i32 to f32
    %16 = vector.shape_cast %6 : vector<1x128xi1> to vector<1x128xi1>
    %17 = vector.broadcast %16 : vector<1x128xi1> to vector<8x128xi1>
    %18 = vector.broadcast %15 : f32 to vector<8x128xf32>
    %19 = arith.select %17, %14, %18 : vector<8x128xi1>, vector<8x128xf32>
    %c127_i32_11 = arith.constant 127 : i32
    %20 = tpu.dynamic_rotate %13 by %c127_i32_11 dim 1 : vector<8x128xf32>, i32 -> vector<8x128xf32>
    %c0_i32_12 = arith.constant 0 : i32
    %21 = arith.sitofp %c0_i32_12 : i32 to f32
    %22 = vector.shape_cast %8 : vector<1x128xi1> to vector<1x128xi1>
    %23 = vector.broadcast %22 : vector<1x128xi1> to vector<8x128xi1>
    %24 = vector.broadcast %21 : f32 to vector<8x128xf32>
    %25 = arith.select %23, %20, %24 : vector<8x128xi1>, vector<8x128xf32>
    %26 = tpu.concatenate %19, %13, %25, %10 in 0 : vector<8x128xf32>, vector<8x128xf32>, vector<8x128xf32>, vector<8x128xf32> -> vector<32x128xf32>
    %cst_13 = arith.constant dense<0.000000e+00> : vector<16x128xf32>
    %27 = tpu.matmul %0, %26, %cst_13 {dimension_numbers = #tpu.dot_dimension_numbers<[1], [0], [0], [1], [0, 0, 1, 1], [], []>} : vector<16x32xf32>, vector<32x128xf32>, vector<16x128xf32> -> vector<16x128xf32>
    %28 = vector.broadcast %1 : vector<16x1xf32> to vector<16x128xf32>
    %29 = arith.addf %27, %28 : vector<16x128xf32>
    %30 = vector.extract_strided_slice %29 {offsets = [0, 0], sizes = [8, 128], strides = [1, 1]} : vector<16x128xf32> to vector<8x128xf32>
    %31 = vector.extract_strided_slice %29 {offsets = [8, 0], sizes = [8, 128], strides = [1, 1]} : vector<16x128xf32> to vector<8x128xf32>
    %cst_14 = arith.constant 1.000000e-01 : f32
    %32 = vector.broadcast %cst_14 : f32 to vector<8x128xf32>
    %33 = arith.mulf %30, %32 : vector<8x128xf32>
    %34 = arith.maximumf %30, %33 : vector<8x128xf32>
    %c1_i32_15 = arith.constant 1 : i32
    %35 = tpu.dynamic_rotate %34 by %c1_i32_15 dim 1 : vector<8x128xf32>, i32 -> vector<8x128xf32>
    %c0_i32_16 = arith.constant 0 : i32
    %36 = arith.sitofp %c0_i32_16 : i32 to f32
    %37 = vector.shape_cast %6 : vector<1x128xi1> to vector<1x128xi1>
    %38 = vector.broadcast %37 : vector<1x128xi1> to vector<8x128xi1>
    %39 = vector.broadcast %36 : f32 to vector<8x128xf32>
    %40 = arith.select %38, %35, %39 : vector<8x128xi1>, vector<8x128xf32>
    %c127_i32_17 = arith.constant 127 : i32
    %41 = tpu.dynamic_rotate %34 by %c127_i32_17 dim 1 : vector<8x128xf32>, i32 -> vector<8x128xf32>
    %c0_i32_18 = arith.constant 0 : i32
    %42 = arith.sitofp %c0_i32_18 : i32 to f32
    %43 = vector.shape_cast %8 : vector<1x128xi1> to vector<1x128xi1>
    %44 = vector.broadcast %43 : vector<1x128xi1> to vector<8x128xi1>
    %45 = vector.broadcast %42 : f32 to vector<8x128xf32>
    %46 = arith.select %44, %41, %45 : vector<8x128xi1>, vector<8x128xf32>
    %47 = tpu.concatenate %40, %34, %46 in 0 : vector<8x128xf32>, vector<8x128xf32>, vector<8x128xf32> -> vector<24x128xf32>
    %cst_19 = arith.constant dense<0.000000e+00> : vector<8x128xf32>
    %48 = tpu.matmul %2, %47, %cst_19 {dimension_numbers = #tpu.dot_dimension_numbers<[1], [0], [0], [1], [0, 0, 1, 1], [], []>} : vector<8x24xf32>, vector<24x128xf32>, vector<8x128xf32> -> vector<8x128xf32>
    %49 = vector.broadcast %3 : vector<8x1xf32> to vector<8x128xf32>
    %50 = arith.addf %48, %49 : vector<8x128xf32>
    %51 = arith.addf %50, %31 : vector<8x128xf32>
    %c0_20 = arith.constant 0 : index
    %c0_21 = arith.constant 0 : index
    %c0_22 = arith.constant 0 : index
    %52 = vector.load %arg6[%c0_20, %c0_21, %c0_22] : memref<1x8x128xf32, #tpu.memory_space<vmem>>, vector<1x8x128xf32>
    %53 = vector.shape_cast %52 : vector<1x8x128xf32> to vector<8x128xf32>
    %54 = vector.shape_cast %51 : vector<8x128xf32> to vector<1x8x128xf32>
    tpu.vector_store %arg6[%c0_20, %c0_21, %c0_22], %54 {strides = array<i32>} : memref<1x8x128xf32, #tpu.memory_space<vmem>>, vector<1x8x128xf32>,
    return
  }
  func.func @transform_0(%arg0: i32) -> (i32, i32, i32) {
    %c0_i32 = arith.constant 0 : i32
    %c0_i32_0 = arith.constant 0 : i32
    %c0_i32_1 = arith.constant 0 : i32
    return %arg0, %c0_i32, %c0_i32_0 : i32, i32, i32
  }
  func.func @transform_1(%arg0: i32) -> (i32, i32) {
    %c0_i32 = arith.constant 0 : i32
    %c0_i32_0 = arith.constant 0 : i32
    %c0_i32_1 = arith.constant 0 : i32
    return %c0_i32, %c0_i32_0 : i32, i32
  }
  func.func @transform_2(%arg0: i32) -> (i32, i32) {
    %c0_i32 = arith.constant 0 : i32
    %c0_i32_0 = arith.constant 0 : i32
    %c0_i32_1 = arith.constant 0 : i32
    return %c0_i32, %c0_i32_0 : i32, i32
  }
  func.func @transform_3(%arg0: i32) -> (i32, i32) {
    %c0_i32 = arith.constant 0 : i32
    %c0_i32_0 = arith.constant 0 : i32
    %c0_i32_1 = arith.constant 0 : i32
    return %c0_i32, %c0_i32_0 : i32, i32
  }
  func.func @transform_4(%arg0: i32) -> (i32, i32) {
    %c0_i32 = arith.constant 0 : i32
    %c0_i32_0 = arith.constant 0 : i32
    %c0_i32_1 = arith.constant 0 : i32
    return %c0_i32, %c0_i32_0 : i32, i32
  }
  func.func @transform_5(%arg0: i32) -> (i32, i32, i32) {
    %c0_i32 = arith.constant 0 : i32
    %c0_i32_0 = arith.constant 0 : i32
    %c0_i32_1 = arith.constant 0 : i32
    return %arg0, %c0_i32, %c0_i32_0 : i32, i32, i32
  }
}

</mosaic_0001>

<llo_original>
// kernel: tpu_custom_call.1
$region0: #{tpu_custom_call.1}
  #allocation0 [shape = 'u32[]', space=smem, size = 0x4, offset = 0x4, fixed_abs, tag = 'smem constant byte address 0x4 - core index']
  #allocation1 [shape = 'u32[144,128]{1,0:T(1,128)}', space=vmem, size = 0x12000, scoped, tag = 'internal scratch']
  %s0 = inlined_call_operand.vmem [shape: f32[2,8,128], index: 0, kind: input, shape index: {}]
  %s1 = inlined_call_operand.hbm [shape: f32[16,32], index: 1, kind: input, shape index: {}]
  %s2 = inlined_call_operand.vmem [shape: f32[16,1], index: 2, kind: input, shape index: {}]
  %s3 = inlined_call_operand.vmem [shape: f32[8,24], index: 3, kind: input, shape index: {}]
  %s4 = inlined_call_operand.vmem [shape: f32[8,1], index: 4, kind: input, shape index: {}]
  %s5 = inlined_call_operand.hbm [shape: f32[2,8,128], index: 5, kind: output, shape index: {}]
  %s6 = sld [smem:[#allocation0]]
  $region57: #{tpu_custom_call.1} parent=0
    _
  %s8 = ssub.s32 1, %s6
  %s9 = scalar_select 0, %s8, %s6
  $region1: #{tpu_custom_call.1} parent=0
    #allocation2 [shape = 'u8[8192]{0}', space=vmem, size = 0x2000, scoped, tag = 'input window, operand 1, single buffered']
    #allocation3 [shape = 's32[2]{0}', space=sflag, size = 0x8, scoped, tag = 'scoped memory for tpu_custom_call.1']
    #allocation4 [shape = 's32[2]{0}', space=sflag, size = 0x8, scoped, tag = 'scoped memory for tpu_custom_call.1']
    #allocation5 [shape = 'u8[8192]{0}', space=vmem, size = 0x2000, scoped, tag = 'output window, operand 0']
    %10 = vsyncpa [#allocation3], 0
    %11 = vsyncpa [#allocation4], 0
    %s12 = scalar_lea.sflag [#allocation4], 1
    %13 = vsyncpa %s12, 0
    loop: start=0, step=1, limit=4
    $region2: #{tpu_custom_call.1} parent=1 // loop_pre_header
      _
    $region3: #{tpu_custom_call.1} parent=1 // loop_header
      %s15 = sphi 0, %s19
      %p16 = scmp.ge.s32.totalorder %s15, 4
      %s25 = sphi 0, %s27
      %s28 = sphi 0, %s25
      %s29 = sphi 0, %s28
      %s45 = sphi 0, %s29
      %s49 = sphi 0, %s49
      %s51 = sphi 0, %s49
      %s52 = sphi 0, %s51
      %s66 = sphi 0, %s52
      %s70 = sphi 0, %s70
      %s72 = sphi 0, %s70
      %s73 = sphi 0, %s72
      %s87 = sphi 0, %s73
      %s91 = sphi 0, %s91
      %s93 = sphi 0, %s91
      %s94 = sphi 0, %s93
      %s108 = sphi 0, %s94
      %s112 = sphi 0, %s112
      %s114 = sphi 0, %s112
      %s115 = sphi 0, %s114
      %s129 = sphi 0, %s115
      %s135 = sphi 0, %s137
      %s138 = sphi 0, %s135
      %s139 = sphi 0, %s138
      %s155 = sphi 0, %s139
    $region4: #{tpu_custom_call.1} parent=1 // loop_header_branch
      %18 = sbr.rel (%p16) target = $region8
    $region5: #{tpu_custom_call.1} parent=1 // loop_body
      %s20 = ssub.s32 %s15, 1
      %s21 = ssub.s32 %s15, 2
      %s22 = sadd.s32 %s15, 1
      %s23 = ssub.s32 %s15, %s22
      %p24 = scmp.eq.s32.totalorder %s23, 0
      %s26 = sadd.s32 %s25, 1
      %s27 = scalar_select %p24, %s25, %s26
      %p30 = pneg %p24
      %p31 = scmp.eq.s32.totalorder %s15, 1
      %p32 = por %p30, %p31
      %p33 = scmp.ne.s32.totalorder %s25, %s28
      %p34 = scmp.eq.s32.totalorder %s15, 0
      %p35 = por %p33, %p34
      %p36 = scmp.ne.s32.totalorder %s25, %s28
      %p37 = scmp.eq.s32.totalorder %s20, 1
      %p38 = por %p36, %p37
      %p39 = scmp.ne.s32.totalorder %s28, %s29
      %p40 = scmp.eq.s32.totalorder %s20, 0
      %p41 = por %p39, %p40
      %p42 = scmp.ne.s32.totalorder %s28, %s29
      %p43 = scmp.eq.s32.totalorder %s21, 1
      %p44 = por %p42, %p43
      %p46 = scmp.ne.s32.totalorder %s29, %s45
      %p47 = scmp.eq.s32.totalorder %s21, 0
      %p48 = por %p46, %p47
      %s50 = sadd.s32 %s49, 1
      %p53 = scmp.eq.s32.totalorder %s15, 1
      %p54 = scmp.ne.s32.totalorder %s49, %s51
      %p55 = scmp.eq.s32.totalorder %s15, 0
      %p56 = por %p54, %p55
      %p57 = scmp.ne.s32.totalorder %s49, %s51
      %p58 = scmp.eq.s32.totalorder %s20, 1
      %p59 = por %p57, %p58
      %p60 = scmp.ne.s32.totalorder %s51, %s52
      %p61 = scmp.eq.s32.totalorder %s20, 0
      %p62 = por %p60, %p61
      %p63 = scmp.ne.s32.totalorder %s51, %s52
      %p64 = scmp.eq.s32.totalorder %s21, 1
      %p65 = por %p63, %p64
      %p67 = scmp.ne.s32.totalorder %s52, %s66
      %p68 = scmp.eq.s32.totalorder %s21, 0
      %p69 = por %p67, %p68
      %s71 = sadd.s32 %s70, 1
      %p74 = scmp.eq.s32.totalorder %s15, 1
      %p75 = scmp.ne.s32.totalorder %s70, %s72
      %p76 = scmp.eq.s32.totalorder %s15, 0
      %p77 = por %p75, %p76
      %p78 = scmp.ne.s32.totalorder %s70, %s72
      %p79 = scmp.eq.s32.totalorder %s20, 1
      %p80 = por %p78, %p79
      %p81 = scmp.ne.s32.totalorder %s72, %s73
      %p82 = scmp.eq.s32.totalorder %s20, 0
      %p83 = por %p81, %p82
      %p84 = scmp.ne.s32.totalorder %s72, %s73
      %p85 = scmp.eq.s32.totalorder %s21, 1
      %p86 = por %p84, %p85
      %p88 = scmp.ne.s32.totalorder %s73, %s87
      %p89 = scmp.eq.s32.totalorder %s21, 0
      %p90 = por %p88, %p89
      %s92 = sadd.s32 %s91, 1
      %p95 = scmp.eq.s32.totalorder %s15, 1
      %p96 = scmp.ne.s32.totalorder %s91, %s93
      %p97 = scmp.eq.s32.totalorder %s15, 0
      %p98 = por %p96, %p97
      %p99 = scmp.ne.s32.totalorder %s91, %s93
      %p100 = scmp.eq.s32.totalorder %s20, 1
      %p101 = por %p99, %p100
      %p102 = scmp.ne.s32.totalorder %s93, %s94
      %p103 = scmp.eq.s32.totalorder %s20, 0
      %p104 = por %p102, %p103
      %p105 = scmp.ne.s32.totalorder %s93, %s94
      %p106 = scmp.eq.s32.totalorder %s21, 1
      %p107 = por %p105, %p106
      %p109 = scmp.ne.s32.totalorder %s94, %s108
      %p110 = scmp.eq.s32.totalorder %s21, 0
      %p111 = por %p109, %p110
      %s113 = sadd.s32 %s112, 1
      %p116 = scmp.eq.s32.totalorder %s15, 1
      %p117 = scmp.ne.s32.totalorder %s112, %s114
      %p118 = scmp.eq.s32.totalorder %s15, 0
      %p119 = por %p117, %p118
      %p120 = scmp.ne.s32.totalorder %s112, %s114
      %p121 = scmp.eq.s32.totalorder %s20, 1
      %p122 = por %p120, %p121
      %p123 = scmp.ne.s32.totalorder %s114, %s115
      %p124 = scmp.eq.s32.totalorder %s20, 0
      %p125 = por %p123, %p124
      %p126 = scmp.ne.s32.totalorder %s114, %s115
      %p127 = scmp.eq.s32.totalorder %s21, 1
      %p128 = por %p126, %p127
      %p130 = scmp.ne.s32.totalorder %s115, %s129
      %p131 = scmp.eq.s32.totalorder %s21, 0
      %p132 = por %p130, %p131
      %s133 = ssub.s32 %s15, %s22
      %p134 = scmp.eq.s32.totalorder %s133, 0
      %s136 = sadd.s32 %s135, 1
      %s137 = scalar_select %p134, %s135, %s136
      %p140 = pneg %p134
      %p141 = scmp.eq.s32.totalorder %s15, 1
      %p142 = por %p140, %p141
      %p143 = scmp.ne.s32.totalorder %s135, %s138
      %p144 = scmp.eq.s32.totalorder %s15, 0
      %p145 = por %p143, %p144
      %p146 = scmp.ne.s32.totalorder %s135, %s138
      %p147 = scmp.eq.s32.totalorder %s20, 1
      %p148 = por %p146, %p147
      %p149 = scmp.ne.s32.totalorder %s138, %s139
      %p150 = scmp.eq.s32.totalorder %s20, 0
      %p151 = por %p149, %p150
      %p152 = scmp.ne.s32.totalorder %s138, %s139
      %p153 = scmp.eq.s32.totalorder %s21, 1
      %p154 = por %p152, %p153
      %p156 = scmp.ne.s32.totalorder %s139, %s155
      %p157 = scmp.eq.s32.totalorder %s21, 0
      %p158 = por %p156, %p157
      %p159 = scmp.le.s32.totalorder 1, %s15
      %p160 = scmp.lt.s32.totalorder %s15, 3
      %p161 = pnand %p159, %p160
      %p162 = pneg %p161
      // Predicated region
      $region9: #{tpu_custom_call.1} parent=5 // pred_check
        _
      $region10: #{tpu_custom_call.1} parent=5 // pred_check_branch
        %164 = sbr.rel (%p161) target = $region12
      $region11: #{tpu_custom_call.1} parent=5 // pred_region
        %s165 = ssub.s32 %s15, 1
        // Predicated region
        $region13: #{tpu_custom_call.1} parent=11 // pred_check
          %p166 = pneg %p62
        $region14: #{tpu_custom_call.1} parent=11 // pred_check_branch
          %168 = sbr.rel (%p166) target = $region16
        $region15: #{tpu_custom_call.1} parent=11 // pred_region
          %s170 = ssub.s32 256, 256
          %171 = vsyncadd [#allocation3], %s170
          %s172 = sshll.u32 [#allocation2], 4
          %s173 = int_to_ptr.vmem [resolvable:$true] %s172
          %178 = dma.hbm_to_vmem [thread:$0]  %s1, 256, %s173, [#allocation3], 128, 128, 8
        $region16: #{tpu_custom_call.1} parent=11 // pred_fallthru
          _
        // Predicated region
        $region17: #{tpu_custom_call.1} parent=11 // pred_check
          %p179 = pneg %p83
        $region18: #{tpu_custom_call.1} parent=11 // pred_check_branch
          %181 = sbr.rel (%p179) target = $region20
        $region19: #{tpu_custom_call.1} parent=11 // pred_region
          _
        $region20: #{tpu_custom_call.1} parent=11 // pred_fallthru
          _
        // Predicated region
        $region21: #{tpu_custom_call.1} parent=11 // pred_check
          %p182 = pneg %p104
        $region22: #{tpu_custom_call.1} parent=11 // pred_check_branch
          %184 = sbr.rel (%p182) target = $region24
        $region23: #{tpu_custom_call.1} parent=11 // pred_region
          _
        $region24: #{tpu_custom_call.1} parent=11 // pred_fallthru
          _
        // Predicated region
        $region25: #{tpu_custom_call.1} parent=11 // pred_check
          %p185 = pneg %p125
        $region26: #{tpu_custom_call.1} parent=11 // pred_check_branch
          %187 = sbr.rel (%p185) target = $region28
        $region27: #{tpu_custom_call.1} parent=11 // pred_region
          _
        $region28: #{tpu_custom_call.1} parent=11 // pred_fallthru
          _
      $region12: #{tpu_custom_call.1} parent=5 // pred_fallthru
        _
      %p188 = scmp.lt.s32.totalorder %s15, 2
      // Predicated region
      $region29: #{tpu_custom_call.1} parent=5 // pred_check
        %p189 = pneg %p188
      $region30: #{tpu_custom_call.1} parent=5 // pred_check_branch
        %191 = sbr.rel (%p189) target = $region32
      $region31: #{tpu_custom_call.1} parent=5 // pred_region
        // Predicated region
        $region33: #{tpu_custom_call.1} parent=31 // pred_check
          %p192 = pneg %p35
        $region34: #{tpu_custom_call.1} parent=31 // pred_check_branch
          %194 = sbr.rel (%p192) target = $region36
        $region35: #{tpu_custom_call.1} parent=31 // pred_region
          %p195 = scmp.lt.s32.totalorder %s15, 1
          %s196 = scalar_select %p195, %s15, 1
          %s197 = smul.addr %s196, 8
          %s198 = scalar_lea.vmem %s0, %s197
        $region36: #{tpu_custom_call.1} parent=31 // pred_fallthru
          _
      $region32: #{tpu_custom_call.1} parent=5 // pred_fallthru
        _
      %p199 = scmp.le.s32.totalorder 1, %s15
      %p200 = scmp.lt.s32.totalorder %s15, 3
      %p201 = pnand %p199, %p200
      %p202 = pneg %p201
      // Predicated region
      $region37: #{tpu_custom_call.1} parent=5 // pred_check
        _
      $region38: #{tpu_custom_call.1} parent=5 // pred_check_branch
        %204 = sbr.rel (%p201) target = $region40
      $region39: #{tpu_custom_call.1} parent=5 // pred_region
        %s205 = ssub.s32 %s15, 1
        // Predicated region
        $region41: #{tpu_custom_call.1} parent=39 // pred_check
          %p206 = pneg %p62
        $region42: #{tpu_custom_call.1} parent=39 // pred_check_branch
          %208 = sbr.rel (%p206) target = $region44
        $region43: #{tpu_custom_call.1} parent=39 // pred_region
          %209 = dma.done [#allocation3], 256
        $region44: #{tpu_custom_call.1} parent=39 // pred_fallthru
          _
        %p210 = scmp.lt.s32.totalorder %s20, 1
        %s211 = scalar_select %p210, %s20, 1
        %s212 = smul.addr %s211, 8
        %s213 = scalar_lea.vmem %s0, %s212
        %p214 = pneg %p41
        %p215 = pneg %p38
        %p216 = pneg %p62
        %p217 = pneg %p59
        %p218 = pneg %p83
        %p219 = pneg %p80
        %p220 = pneg %p104
        %p221 = pneg %p101
        %p222 = pneg %p125
        %p223 = pneg %p122
        %p224 = pneg %p151
        %p225 = pneg %p148
        %s226 = sand.u32 %s138, 1
        %s227 = scalar_lea.sflag [#allocation4], %s226
        %s228 = sand.u32 %s138, 1
        %s229 = smul.addr %s228, 8
        %s230 = scalar_lea.vmem [#allocation5], %s229
        %p231 = scmp.lt.s32.totalorder %s20, 1
        %s232 = scalar_select %p231, %s20, 1
        %s233 = smul.addr %s232, 8
        %s234 = scalar_lea.vmem %s0, %s233
        %v235 = vld [vmem:[#allocation2] sm:$0xff]
        %v236 = vld [vmem:[#allocation2 + $0x8] sm:$0xff]
        %v237 = vld [vmem:[%s2] sm:$0xff]
        %v238 = vld [vmem:[%s2 + $0x8] sm:$0xff]
        %v239 = vld [vmem:[%s3] sm:$0xff]
        %v240 = vld [vmem:[%s4] sm:$0xff]
        %v241 = vlaneseq
        %v242 = vand.u32 %v241, 127
        %vm243 = vcmp.gt.s32.totalorder %v242, 0
        %vm244 = vcmp.lt.s32.totalorder %v242, 127
        %v245 = vld [vmem:[%s234] sm:$0xff]
        %v246 = vmul.f32 %v245, 0.1
        %v247 = vmax.f32 %v245, %v246
        %248 = vrot.lane.b32.xlu0 %v247, 1
        %v249 = vpop.permute.xlu0 %248
        %v250 = vsel %vm243, 1, 0
        %vm251 = vcmp.eq.s32.totalorder %v250, 1
        %v252 = vsel %vm251, %v249, 0.0
        %253 = vrot.lane.b32.xlu0 %v247, 127
        %v254 = vpop.permute.xlu0 %253
        %v255 = vsel %vm244, 1, 0
        %vm256 = vcmp.eq.s32.totalorder %v255, 1
        %v257 = vsel %vm256, %v254, 0.0
        %259 = vset.pattern.permute.xlu0 0
        %260 = vperm.xlu0 %259, %v237
        %v261 = vpop.permute.xlu0 %260
        %264 = vset.pattern.permute.xlu0 0
        %265 = vperm.xlu0 %264, %v238
        %v266 = vpop.permute.xlu0 %265
        %vm268 = vcmask 261120
        %v270 = vsel %vm268, %v235, 0
        %v273 = vsel %vm268, %v236, 0
        %275 = vmatprep.subr.mxu0 0.0
        %276 = vmatpush1.msra.mxu0 0.0
        %277 = vmatprep.subr.mxu0 0.0
        %278 = vmatpush1.msra.mxu0 0.0
        %279 = vmatprep.subr.mxu0 0.0
        %280 = vmatpush1.msra.mxu0 0.0
        %281 = vmatprep.subr.mxu0 0.0
        %282 = vmatpush1.msra.mxu0 0.0
        %283 = vmatprep.subr.mxu0 0.0
        %284 = vmatpush1.msra.mxu0 0.0
        %285 = vmatprep.subr.mxu0 0.0
        %286 = vmatpush1.msra.mxu0 0.0
        %287 = vmatprep.subr.mxu0 0.0
        %288 = vmatpush1.msra.mxu0 0.0
        %289 = vmatprep.subr.mxu0 0.0
        %290 = vmatpush1.msra.mxu0 0.0
        %291 = vmatprep.subr.mxu0 0.0
        %292 = vmatpush1.msra.mxu0 0.0
        %293 = vmatprep.subr.mxu0 0.0
        %294 = vmatpush1.msra.mxu0 0.0
        %295 = vmatprep.subr.mxu0 0.0
        %296 = vmatpush1.msra.mxu0 0.0
        %297 = vmatprep.subr.mxu0 0.0
        %298 = vmatpush1.msra.mxu0 0.0
        %299 = vmatprep.subr.mxu0 0.0
        %300 = vmatpush1.msra.mxu0 %v245
        %301 = vmatprep.subr.mxu0 0.0
        %302 = vmatpush1.msra.mxu0 %v257
        %303 = vmatprep.subr.mxu0 0.0
        %304 = vmatpush1.msra.mxu0 %v247
        %305 = vmatprep.subr.mxu0 0.0
        %306 = vmatpush1.msra.mxu0 %v252
        %307 = vmatprep.subr.mxu0 0.0
        %308 = vmatpush2.msra.mxu0 0.0
        %309 = vmatprep.subr.mxu0 0.0
        %310 = vmatpush2.msra.mxu0 0.0
        %311 = vmatprep.subr.mxu0 0.0
        %312 = vmatpush2.msra.mxu0 0.0
        %313 = vmatprep.subr.mxu0 0.0
        %314 = vmatpush2.msra.mxu0 0.0
        %315 = vmatprep.subr.mxu0 0.0
        %316 = vmatpush2.msra.mxu0 0.0
        %317 = vmatprep.subr.mxu0 0.0
        %318 = vmatpush2.msra.mxu0 0.0
        %319 = vmatprep.subr.mxu0 0.0
        %320 = vmatpush2.msra.mxu0 0.0
        %321 = vmatprep.subr.mxu0 0.0
        %322 = vmatpush2.msra.mxu0 0.0
        %323 = vmatprep.subr.mxu0 0.0
        %324 = vmatpush2.msra.mxu0 0.0
        %325 = vmatprep.subr.mxu0 0.0
        %326 = vmatpush2.msra.mxu0 0.0
        %327 = vmatprep.subr.mxu0 0.0
        %328 = vmatpush2.msra.mxu0 0.0
        %329 = vmatprep.subr.mxu0 0.0
        %330 = vmatpush2.msra.mxu0 0.0
        %331 = vmatprep.subr.mxu0 0.0
        %332 = vmatpush2.msra.mxu0 0.0
        %333 = vmatprep.subr.mxu0 0.0
        %334 = vmatpush2.msra.mxu0 0.0
        %335 = vmatprep.subr.mxu0 0.0
        %336 = vmatpush2.msra.mxu0 0.0
        %337 = vmatprep.subr.mxu0 0.0
        %338 = vmatpush2.msra.mxu0 0.0
        %339 = vmatprep.mubr.f32.mxu0 0.0
        %340 = vmatmul.mubr.f32.gmra.mxu0 %v270
        %v341 = vpop.f32.mrf.mxu0
        %v342 = vadd.f32 %v261, %v341
        %v343 = vpop.f32.mrf.mxu0
        %344 = vmatprep.mubr.f32.mxu0 0.0
        %345 = vmatmul.mubr.f32.gmra.mxu0 %v273
        %v346 = vpop.f32.mrf.mxu0
        %v347 = vadd.f32 %v266, %v346
        %v348 = vpop.f32.mrf.mxu0
        %349 = vdwg.mxu0
        %v350 = vmul.f32 %v342, 0.1
        %v351 = vmax.f32 %v342, %v350
        %352 = vrot.lane.b32.xlu0 %v351, 1
        %v353 = vpop.permute.xlu0 %352
        %v354 = vsel %vm251, %v353, 0.0
        %355 = vrot.lane.b32.xlu0 %v351, 127
        %v356 = vpop.permute.xlu0 %355
        %v357 = vsel %vm256, %v356, 0.0
        %359 = vset.pattern.permute.xlu0 0
        %360 = vperm.xlu0 %359, %v240
        %v361 = vpop.permute.xlu0 %360
        %vm363 = vcmask 195584
        %v365 = vsel %vm363, %v239, 0
        %367 = vmatprep.subr.mxu0 0.0
        %368 = vmatpush1.msra.mxu0 0.0
        %369 = vmatprep.subr.mxu0 0.0
        %370 = vmatpush1.msra.mxu0 0.0
        %371 = vmatprep.subr.mxu0 0.0
        %372 = vmatpush1.msra.mxu0 0.0
        %373 = vmatprep.subr.mxu0 0.0
        %374 = vmatpush1.msra.mxu0 0.0
        %375 = vmatprep.subr.mxu0 0.0
        %376 = vmatpush1.msra.mxu0 0.0
        %377 = vmatprep.subr.mxu0 0.0
        %378 = vmatpush1.msra.mxu0 0.0
        %379 = vmatprep.subr.mxu0 0.0
        %380 = vmatpush1.msra.mxu0 0.0
        %381 = vmatprep.subr.mxu0 0.0
        %382 = vmatpush1.msra.mxu0 0.0
        %383 = vmatprep.subr.mxu0 0.0
        %384 = vmatpush1.msra.mxu0 0.0
        %385 = vmatprep.subr.mxu0 0.0
        %386 = vmatpush1.msra.mxu0 0.0
        %387 = vmatprep.subr.mxu0 0.0
        %388 = vmatpush1.msra.mxu0 0.0
        %389 = vmatprep.subr.mxu0 0.0
        %390 = vmatpush1.msra.mxu0 0.0
        %391 = vmatprep.subr.mxu0 0.0
        %392 = vmatpush1.msra.mxu0 0.0
        %393 = vmatprep.subr.mxu0 0.0
        %394 = vmatpush1.msra.mxu0 %v357
        %395 = vmatprep.subr.mxu0 0.0
        %396 = vmatpush1.msra.mxu0 %v351
        %397 = vmatprep.subr.mxu0 0.0
        %398 = vmatpush1.msra.mxu0 %v354
        %399 = vmatprep.subr.mxu0 0.0
        %400 = vmatpush2.msra.mxu0 0.0
        %401 = vmatprep.subr.mxu0 0.0
        %402 = vmatpush2.msra.mxu0 0.0
        %403 = vmatprep.subr.mxu0 0.0
        %404 = vmatpush2.msra.mxu0 0.0
        %405 = vmatprep.subr.mxu0 0.0
        %406 = vmatpush2.msra.mxu0 0.0
        %407 = vmatprep.subr.mxu0 0.0
        %408 = vmatpush2.msra.mxu0 0.0
        %409 = vmatprep.subr.mxu0 0.0
        %410 = vmatpush2.msra.mxu0 0.0
        %411 = vmatprep.subr.mxu0 0.0
        %412 = vmatpush2.msra.mxu0 0.0
        %413 = vmatprep.subr.mxu0 0.0
        %414 = vmatpush2.msra.mxu0 0.0
        %415 = vmatprep.subr.mxu0 0.0
        %416 = vmatpush2.msra.mxu0 0.0
        %417 = vmatprep.subr.mxu0 0.0
        %418 = vmatpush2.msra.mxu0 0.0
        %419 = vmatprep.subr.mxu0 0.0
        %420 = vmatpush2.msra.mxu0 0.0
        %421 = vmatprep.subr.mxu0 0.0
        %422 = vmatpush2.msra.mxu0 0.0
        %423 = vmatprep.subr.mxu0 0.0
        %424 = vmatpush2.msra.mxu0 0.0
        %425 = vmatprep.subr.mxu0 0.0
        %426 = vmatpush2.msra.mxu0 0.0
        %427 = vmatprep.subr.mxu0 0.0
        %428 = vmatpush2.msra.mxu0 0.0
        %429 = vmatprep.subr.mxu0 0.0
        %430 = vmatpush2.msra.mxu0 0.0
        %431 = vmatprep.mubr.f32.mxu0 0.0
        %432 = vmatmul.mubr.f32.gmra.mxu0 %v365
        %v433 = vpop.f32.mrf.mxu0
        %v434 = vadd.f32 %v361, %v433
        %v435 = vpop.f32.mrf.mxu0
        %436 = vdwg.mxu0
        %v437 = vadd.f32 %v434, %v347
        %438 = vst [vmem:[%s230] sm:$0xff] %v437
        %s439 = sand.u32 %s138, 1
        %s440 = scalar_lea.sflag [#allocation4], %s439
        %s441 = sand.u32 %s138, 1
        %s442 = smul.addr %s441, 8
        %s443 = scalar_lea.vmem [#allocation5], %s442
        // Predicated region
        $region45: #{tpu_custom_call.1} parent=39 // pred_check
          %p444 = pneg %p148
        $region46: #{tpu_custom_call.1} parent=39 // pred_check_branch
          %446 = sbr.rel (%p444) target = $region48
        $region47: #{tpu_custom_call.1} parent=39 // pred_region
          %s448 = ssub.s32 128, 128
          %449 = vsyncadd %s440, %s448
          %s450 = smul.addr %s20, 128
          %s451 = scalar_lea.hbm %s5, %s450
          %s453 = sshll.u32 %s443, 4
          %s454 = int_to_ptr.vmem [resolvable:$true] %s453
          %456 = dma.vmem_to_hbm [thread:$0]  %s454, 128, %s451, %s440
        $region48: #{tpu_custom_call.1} parent=39 // pred_fallthru
          _
      $region40: #{tpu_custom_call.1} parent=5 // pred_fallthru
        _
      %p457 = scmp.le.s32.totalorder 2, %s15
      // Predicated region
      $region49: #{tpu_custom_call.1} parent=5 // pred_check
        %p458 = pneg %p457
      $region50: #{tpu_custom_call.1} parent=5 // pred_check_branch
        %460 = sbr.rel (%p458) target = $region52
      $region51: #{tpu_custom_call.1} parent=5 // pred_region
        %s461 = ssub.s32 %s15, 2
        // Predicated region
        $region53: #{tpu_custom_call.1} parent=51 // pred_check
          %p462 = pneg %p154
        $region54: #{tpu_custom_call.1} parent=51 // pred_check_branch
          %464 = sbr.rel (%p462) target = $region56
        $region55: #{tpu_custom_call.1} parent=51 // pred_region
          %s465 = sand.u32 %s139, 1
          %s466 = scalar_lea.sflag [#allocation4], %s465
          %s467 = sand.u32 %s139, 1
          %s468 = smul.addr %s467, 8
          %s469 = scalar_lea.vmem [#allocation5], %s468
          %470 = dma.done %s466, 128
        $region56: #{tpu_custom_call.1} parent=51 // pred_fallthru
          _
      $region52: #{tpu_custom_call.1} parent=5 // pred_fallthru
        _
    $region6: #{tpu_custom_call.1} parent=1 // loop_footer
      %s19 = sadd.s32 1, %s15
    $region7: #{tpu_custom_call.1} parent=1 // loop_footer_branch
      %14 = sbr.rel target = $region3
    $region8: #{tpu_custom_call.1} parent=1 // loop_exit
      _
    %471 = vsyncpa [#allocation3], 1
    %s472 = scalar_lea.sflag [#allocation3], 1
    %473 = vsyncpa %s472, 1
    %474 = vsyncpa [#allocation4], 1
    %s475 = scalar_lea.sflag [#allocation4], 1
    %476 = vsyncpa %s475, 1

</llo_original>
